<compile_context>
chip_gen: v5e
topology: v5e:2x2
jax: 0.10.0
libtpu: 0.0.40
codegen_flags: <defaults>
</compile_context>

<pallas_src>
import functools
import math

import jax
import jax.numpy as jnp
from jax import lax
from jax.experimental import pallas as pl
from jax.experimental.pallas import tpu as pltpu

_LANES = 128
_BLOCK_CAP_BYTES = 4 * 1024 * 1024   # per-input-block cap; 2 inputs x 2 bufs = 16 MiB
_VMEM_LIMIT = 32 * 1024 * 1024       # >= v5e/v6e scoped default, <= v7x 64 MiB physical
_ROW_CAP = 32                        # accumulator rows per step: 3 x (32,128) f32 = 12 vregs
_UNROLL = 8


@functools.lru_cache(maxsize=1)
def _parallel_chunks():
    """2 on dual-TensorCore v7x, else 1 (extra grid level is pure overhead on v5e/v6e)."""
    try:
        kind = str(jax.devices()[0].device_kind).lower()
    except Exception:
        return 1
    return 2 if "v7" in kind else 1


def _pick_tile_r(R, pack):
    """Largest divisor of R that is <= _ROW_CAP and sublane-aligned; falls back to R."""
    if R <= _ROW_CAP:
        return R
    for align in (pack, 8):
        cand = (_ROW_CAP // align) * align
        while cand >= align:
            if R % cand == 0:
                return cand
            cand -= align
    return R  # rare (no aligned divisor <= cap); full-dim block is still correct


def _partial_sums_kernel(x_ref, t_ref, dot_ref, xx_ref, tt_ref, *, n_slices, unroll):
    """Grid = (row_tile, parallel_chunk, reduction_step).

    Outputs are (1, tile_r, 128) f32 per-lane partial sums, resident in VMEM across the
    reduction axis (accumulator pattern).  Each step streams one (tile_r, tile_m) block of
    each input and does only lane-aligned slice loads + VPU multiply-adds, so the kernel
    stays HBM-bound.
    """
    k = pl.program_id(2)

    @pl.when(k == 0)
    def _():
        dot_ref[...] = jnp.zeros_like(dot_ref)
        xx_ref[...] = jnp.zeros_like(xx_ref)
        tt_ref[...] = jnp.zeros_like(tt_ref)

    def body(j, carry):
        d, xx, tt = carry
        start = pl.multiple_of(j * _LANES, _LANES)
        xs = x_ref[:, pl.ds(start, _LANES)].astype(jnp.float32)
        ts = t_ref[:, pl.ds(start, _LANES)].astype(jnp.float32)
        return (d + xs * ts, xx + xs * xs, tt + ts * ts)

    d, xx, tt = lax.fori_loop(
        0, n_slices, body, (dot_ref[0], xx_ref[0], tt_ref[0]), unroll=unroll
    )
    dot_ref[0] = d
    xx_ref[0] = xx
    tt_ref[0] = tt


def _run_partial_sums(xr, tr, tile_r, tile_m, P, K):
    R = xr.shape[0]
    RT = R // tile_r
    n_slices = tile_m // _LANES
    unroll = max(1, min(_UNROLL, n_slices))
    kernel = functools.partial(_partial_sums_kernel, n_slices=n_slices, unroll=unroll)

    part_shape = jax.ShapeDtypeStruct((P, R, _LANES), jnp.float32)
    in_spec = pl.BlockSpec((tile_r, tile_m), lambda r, p, k: (r, p * K + k))
    out_spec = pl.BlockSpec((1, tile_r, _LANES), lambda r, p, k: (p, r, 0))

    return pl.pallas_call(
        kernel,
        out_shape=(part_shape, part_shape, part_shape),
        grid_spec=pltpu.PrefetchScalarGridSpec(
            num_scalar_prefetch=0,
            grid=(RT, P, K),
            in_specs=[in_spec, in_spec],
            out_specs=[out_spec, out_spec, out_spec],
        ),
        compiler_params=pltpu.CompilerParams(
            dimension_semantics=("parallel", "parallel", "arbitrary"),
            vmem_limit_bytes=_VMEM_LIMIT,
        ),
    )(xr, tr)


@jax.jit
def content_loss_forward(x, target):
    """Mirrors ContentLoss.forward: returns (input, loss)."""
    C = x.shape[1]
    xf = x.reshape(C, -1)          # row-major: same element order as torch .view(C, -1)
    tf = target.reshape(C, -1)     # stream native dtype; cast to f32 in-kernel
    M = xf.shape[1]
    itemsize = x.dtype.itemsize
    pack = 8 * max(1, 4 // itemsize)          # sublanes per vreg for this dtype

    # Fold factor: power of two making C*f hit the sublane packing when possible, while
    # dividing M exactly so the fold reshape is a free contiguous reshape (no HBM copy).
    f_ideal = pack // math.gcd(C, pack)
    f = math.gcd(f_ideal, M & -M)
    if M // f < _LANES:
        f = 1                                  # folding would leave < 128 cols
    R = C * f
    Mf = M // f
    tiny = Mf < _LANES

    if tiny:
        # Sub-128-column input: one zero-padded 128-wide block (a few KB of padding).
        xr = jnp.pad(xf, ((0, 0), (0, _LANES - Mf)))
        tr = jnp.pad(tf, ((0, 0), (0, _LANES - Mf)))
        tile_r, tile_m, P, K = R, _LANES, 1, 1
        Mf_main = Mf
    else:
        xr = xf.reshape(R, Mf)                 # free: contiguous row-major reshape
        tr = tf.reshape(R, Mf)
        tile_r = _pick_tile_r(R, pack)

        P = _parallel_chunks()
        if Mf // P < _LANES:
            P = 1
        per_chunk = Mf // P

        # Byte-capped, lane-aligned tile width (the hard VMEM ceiling is this cap x 4).
        tile_m = (_BLOCK_CAP_BYTES // (tile_r * itemsize)) // _LANES * _LANES
        tile_m = max(_LANES, min(tile_m, (per_chunk // _LANES) * _LANES))
        K = per_chunk // tile_m
        if K < 2 and per_chunk >= 2 * _LANES:  # keep >=2 steps so the k-axis pipelines
            tile_m = ((per_chunk // 2) // _LANES) * _LANES
            K = per_chunk // tile_m
        Mf_main = P * K * tile_m               # folded columns covered by the kernel

    dot_p, xx_p, tt_p = _run_partial_sums(xr, tr, tile_r, tile_m, P, K)

    # Fold parallel chunks / folded rows / lanes back to per-channel sums.
    dot = dot_p.reshape(P, C, f, _LANES).sum(axis=(0, 2, 3))
    xx = xx_p.reshape(P, C, f, _LANES).sum(axis=(0, 2, 3))
    tt = tt_p.reshape(P, C, f, _LANES).sum(axis=(0, 2, 3))

    # Ragged tail (folded columns the kernel did not cover) reduced with plain jnp:
    # reads only the tail bytes, no full-array rewrite.
    if (not tiny) and (Mf_main < Mf):
        x_tail = xr[:, Mf_main:].astype(jnp.float32)
        t_tail = tr[:, Mf_main:].astype(jnp.float32)
        dot = dot + jnp.sum(x_tail * t_tail, axis=-1).reshape(C, f).sum(-1)
        xx = xx + jnp.sum(x_tail * x_tail, axis=-1).reshape(C, f).sum(-1)
        tt = tt + jnp.sum(t_tail * t_tail, axis=-1).reshape(C, f).sum(-1)

    eps = jnp.float32(1e-8)
    cos = dot / jnp.maximum(jnp.sqrt(xx) * jnp.sqrt(tt), eps)
    loss = jnp.float32(1.0) - jnp.sum(cos) / jnp.float32(C)

    # forward() returns the input unchanged; the loss is the side value.
    return x, loss


def _reference_loss(x, target):
    C = x.shape[1]
    xf = x.reshape(C, -1).astype(jnp.float32)
    tf = target.reshape(C, -1).astype(jnp.float32)
    dot = jnp.sum(xf * tf, axis=-1)
    nx = jnp.sqrt(jnp.sum(xf * xf, axis=-1))
    nt = jnp.sqrt(jnp.sum(tf * tf, axis=-1))
    cos = dot / jnp.maximum(nx * nt, jnp.float32(1e-8))
    return 1.0 - jnp.sum(cos) / C


if __name__ == "__main__":
    key = jax.random.PRNGKey(0)

    cases = [
        ((2, 4, 16, 16), jnp.float32),    # module-sized demo
        ((1, 3, 15, 15), jnp.float32),    # exercises the ragged jnp tail / C not dividing 8
        ((2, 4, 16, 16), jnp.bfloat16),   # exercises native-dtype streaming + in-kernel cast
    ]
    for shape, dtype in cases:
        key, k1, k2 = jax.random.split(key, 3)
        x = jax.random.normal(k1, shape, dtype=jnp.float32).astype(dtype)
        t = jax.random.normal(k2, shape, dtype=jnp.float32).astype(dtype)

        out, loss = content_loss_forward(x, t)
        out = jax.block_until_ready(out)
        loss = jax.block_until_ready(loss)

        ref = _reference_loss(x, t)
        assert jnp.allclose(out, x), "forward must return its input unchanged"
        assert jnp.allclose(loss, ref, atol=2e-4, rtol=2e-4), (shape, dtype, loss, ref)

    print("KERNEL_OK")
</pallas_src>

<mosaic_0001>
module attributes {stable_mosaic.version = 11 : i64} {
  func.func @_partial_sums_kernel(%arg0: i32, %arg1: i32, %arg2: i32, %arg3: memref<8x128xf32, #tpu.memory_space<vmem>>, %arg4: memref<8x128xf32, #tpu.memory_space<vmem>>, %arg5: memref<1x8x128xf32, #tpu.memory_space<vmem>>, %arg6: memref<1x8x128xf32, #tpu.memory_space<vmem>>, %arg7: memref<1x8x128xf32, #tpu.memory_space<vmem>>) attributes {dimension_semantics = [#tpu.dimension_semantics<parallel>, #tpu.dimension_semantics<parallel>, #tpu.dimension_semantics<arbitrary>], iteration_bounds = array<i64: 1, 1, 2>, scalar_prefetch = 0 : i64, scratch_operands = 0 : i64, tpu.core_type = #tpu.core_type<tc>, window_params = [{transform_indices = @transform_0, window_bounds = array<i64: 8, 128>}, {transform_indices = @transform_1, window_bounds = array<i64: 8, 128>}, {transform_indices = @transform_2, window_bounds = array<i64: 1, 8, 128>}, {transform_indices = @transform_3, window_bounds = array<i64: 1, 8, 128>}, {transform_indices = @transform_4, window_bounds = array<i64: 1, 8, 128>}]} {
    %c0_i32 = arith.constant 0 : i32
    %0 = arith.cmpi eq, %arg2, %c0_i32 : i32
    %1 = arith.extui %0 : i1 to i32
    %c0_i32_0 = arith.constant 0 : i32
    %2 = arith.cmpi ne, %1, %c0_i32_0 : i32
    scf.if %2 {
      %cst = arith.constant 0.000000e+00 : f32
      %30 = vector.broadcast %cst : f32 to vector<1x8x128xf32>
      %c0_21 = arith.constant 0 : index
      %c0_22 = arith.constant 0 : index
      %c0_23 = arith.constant 0 : index
      %31 = vector.load %arg5[%c0_21, %c0_22, %c0_23] : memref<1x8x128xf32, #tpu.memory_space<vmem>>, vector<1x8x128xf32>
      tpu.vector_store %arg5[%c0_21, %c0_22, %c0_23], %30 {strides = array<i32>} : memref<1x8x128xf32, #tpu.memory_space<vmem>>, vector<1x8x128xf32>,
      %cst_24 = arith.constant 0.000000e+00 : f32
      %32 = vector.broadcast %cst_24 : f32 to vector<1x8x128xf32>
      %c0_25 = arith.constant 0 : index
      %c0_26 = arith.constant 0 : index
      %c0_27 = arith.constant 0 : index
      %33 = vector.load %arg6[%c0_25, %c0_26, %c0_27] : memref<1x8x128xf32, #tpu.memory_space<vmem>>, vector<1x8x128xf32>
      tpu.vector_store %arg6[%c0_25, %c0_26, %c0_27], %32 {strides = array<i32>} : memref<1x8x128xf32, #tpu.memory_space<vmem>>, vector<1x8x128xf32>,
      %cst_28 = arith.constant 0.000000e+00 : f32
      %34 = vector.broadcast %cst_28 : f32 to vector<1x8x128xf32>
      %c0_29 = arith.constant 0 : index
      %c0_30 = arith.constant 0 : index
      %c0_31 = arith.constant 0 : index
      %35 = vector.load %arg7[%c0_29, %c0_30, %c0_31] : memref<1x8x128xf32, #tpu.memory_space<vmem>>, vector<1x8x128xf32>
      tpu.vector_store %arg7[%c0_29, %c0_30, %c0_31], %34 {strides = array<i32>} : memref<1x8x128xf32, #tpu.memory_space<vmem>>, vector<1x8x128xf32>,
    } else {
    }
    %c0 = arith.constant 0 : index
    %c0_1 = arith.constant 0 : index
    %c0_2 = arith.constant 0 : index
    %3 = vector.load %arg5[%c0, %c0_1, %c0_2] : memref<1x8x128xf32, #tpu.memory_space<vmem>>, vector<1x8x128xf32>
    %4 = vector.shape_cast %3 : vector<1x8x128xf32> to vector<8x128xf32>
    %c0_3 = arith.constant 0 : index
    %c0_4 = arith.constant 0 : index
    %c0_5 = arith.constant 0 : index
    %5 = vector.load %arg6[%c0_3, %c0_4, %c0_5] : memref<1x8x128xf32, #tpu.memory_space<vmem>>, vector<1x8x128xf32>
    %6 = vector.shape_cast %5 : vector<1x8x128xf32> to vector<8x128xf32>
    %c0_6 = arith.constant 0 : index
    %c0_7 = arith.constant 0 : index
    %c0_8 = arith.constant 0 : index
    %7 = vector.load %arg7[%c0_6, %c0_7, %c0_8] : memref<1x8x128xf32, #tpu.memory_space<vmem>>, vector<1x8x128xf32>
    %8 = vector.shape_cast %7 : vector<1x8x128xf32> to vector<8x128xf32>
    %c0_i32_9 = arith.constant 0 : i32
    %c128_i32 = arith.constant 128 : i32
    %9 = arith.muli %c0_i32_9, %c128_i32 : i32
    %10 = tpu.assume_multiple %9, 128 : i32
    %c0_10 = arith.constant 0 : index
    %11 = arith.index_cast %10 : i32 to index
    %12 = vector.load %arg3[%c0_10, %11] : memref<8x128xf32, #tpu.memory_space<vmem>>, vector<8x128xf32>
    %c0_11 = arith.constant 0 : index
    %13 = arith.index_cast %10 : i32 to index
    %14 = vector.load %arg4[%c0_11, %13] : memref<8x128xf32, #tpu.memory_space<vmem>>, vector<8x128xf32>
    %15 = arith.mulf %12, %14 : vector<8x128xf32>
    %16 = arith.addf %4, %15 : vector<8x128xf32>
    %17 = arith.mulf %12, %12 : vector<8x128xf32>
    %18 = arith.addf %6, %17 : vector<8x128xf32>
    %19 = arith.mulf %14, %14 : vector<8x128xf32>
    %20 = arith.addf %8, %19 : vector<8x128xf32>
    %c1_i32 = arith.constant 1 : i32
    %c0_12 = arith.constant 0 : index
    %c0_13 = arith.constant 0 : index
    %c0_14 = arith.constant 0 : index
    %21 = vector.load %arg5[%c0_12, %c0_13, %c0_14] : memref<1x8x128xf32, #tpu.memory_space<vmem>>, vector<1x8x128xf32>
    %22 = vector.shape_cast %21 : vector<1x8x128xf32> to vector<8x128xf32>
    %23 = vector.shape_cast %16 : vector<8x128xf32> to vector<1x8x128xf32>
    tpu.vector_store %arg5[%c0_12, %c0_13, %c0_14], %23 {strides = array<i32>} : memref<1x8x128xf32, #tpu.memory_space<vmem>>, vector<1x8x128xf32>,
    %c0_15 = arith.constant 0 : index
    %c0_16 = arith.constant 0 : index
    %c0_17 = arith.constant 0 : index
    %24 = vector.load %arg6[%c0_15, %c0_16, %c0_17] : memref<1x8x128xf32, #tpu.memory_space<vmem>>, vector<1x8x128xf32>
    %25 = vector.shape_cast %24 : vector<1x8x128xf32> to vector<8x128xf32>
    %26 = vector.shape_cast %18 : vector<8x128xf32> to vector<1x8x128xf32>
    tpu.vector_store %arg6[%c0_15, %c0_16, %c0_17], %26 {strides = array<i32>} : memref<1x8x128xf32, #tpu.memory_space<vmem>>, vector<1x8x128xf32>,
    %c0_18 = arith.constant 0 : index
    %c0_19 = arith.constant 0 : index
    %c0_20 = arith.constant 0 : index
    %27 = vector.load %arg7[%c0_18, %c0_19, %c0_20] : memref<1x8x128xf32, #tpu.memory_space<vmem>>, vector<1x8x128xf32>
    %28 = vector.shape_cast %27 : vector<1x8x128xf32> to vector<8x128xf32>
    %29 = vector.shape_cast %20 : vector<8x128xf32> to vector<1x8x128xf32>
    tpu.vector_store %arg7[%c0_18, %c0_19, %c0_20], %29 {strides = array<i32>} : memref<1x8x128xf32, #tpu.memory_space<vmem>>, vector<1x8x128xf32>,
    return
  }
  func.func @transform_0(%arg0: i32, %arg1: i32, %arg2: i32) -> (i32, i32) {
    %c2_i32 = arith.constant 2 : i32
    %0 = arith.muli %arg1, %c2_i32 : i32
    %1 = arith.addi %0, %arg2 : i32
    %c0_i32 = arith.constant 0 : i32
    return %arg0, %1 : i32, i32
  }
  func.func @transform_1(%arg0: i32, %arg1: i32, %arg2: i32) -> (i32, i32) {
    %c2_i32 = arith.constant 2 : i32
    %0 = arith.muli %arg1, %c2_i32 : i32
    %1 = arith.addi %0, %arg2 : i32
    %c0_i32 = arith.constant 0 : i32
    return %arg0, %1 : i32, i32
  }
  func.func @transform_2(%arg0: i32, %arg1: i32, %arg2: i32) -> (i32, i32, i32) {
    %c0_i32 = arith.constant 0 : i32
    %c0_i32_0 = arith.constant 0 : i32
    return %arg1, %arg0, %c0_i32 : i32, i32, i32
  }
  func.func @transform_3(%arg0: i32, %arg1: i32, %arg2: i32) -> (i32, i32, i32) {
    %c0_i32 = arith.constant 0 : i32
    %c0_i32_0 = arith.constant 0 : i32
    return %arg1, %arg0, %c0_i32 : i32, i32, i32
  }
  func.func @transform_4(%arg0: i32, %arg1: i32, %arg2: i32) -> (i32, i32, i32) {
    %c0_i32 = arith.constant 0 : i32
    %c0_i32_0 = arith.constant 0 : i32
    return %arg1, %arg0, %c0_i32 : i32, i32, i32
  }
}

</mosaic_0001>

<llo_original>
// kernel: content_loss_forward.1
$region0: #{content_loss_forward.1}
  #allocation0 [shape = 'u32[]', space=smem, size = 0x4, offset = 0x4, fixed_abs, tag = 'smem constant byte address 0x4 - core index']
  #allocation1 [shape = 'u32[72,128]{1,0:T(1,128)}', space=vmem, size = 0x9000, scoped, tag = 'internal scratch']
  %s0 = inlined_call_operand.vmem [shape: f32[8,256], index: 0, kind: input, shape index: {}]
  %s1 = inlined_call_operand.vmem [shape: f32[8,256], index: 1, kind: input, shape index: {}]
  %s2 = inlined_call_operand.vmem [shape: f32[1,8,128], index: 2, kind: output, shape index: {0}]
  %s3 = inlined_call_operand.vmem [shape: f32[1,8,128], index: 3, kind: output, shape index: {1}]
  %s4 = inlined_call_operand.vmem [shape: f32[1,8,128], index: 4, kind: output, shape index: {2}]
  %5 = xla_tuple %s2, %s3, %s4
  %s6 = sld [smem:[#allocation0]]
  $region61: #{content_loss_forward.1} parent=0
    _
  %s8 = ssub.s32 1, %s6
  %s9 = scalar_select 0, %s8, %s6
  loop: start=0, step=1, limit=4
  $region2: #{content_loss_forward.1} parent=0 // loop_pre_header
    _
  $region3: #{content_loss_forward.1} parent=0 // loop_header
    %s11 = sphi 0, %s15
    %p12 = scmp.ge.s32.totalorder %s11, 4
    %s18 = sphi 0, %s37
    %s19 = sphi 0, %s33
    %s20 = sphi 0, %s29
    %s21 = sphi 0, %s18
    %s22 = sphi 0, %s19
    %s23 = sphi 0, %s20
    %s24 = sphi 0, %s21
    %s25 = sphi 0, %s22
    %s26 = sphi 0, %s23
    %s46 = sphi 0, %s48
    %s49 = sphi 0, %s46
    %s50 = sphi 0, %s49
    %s66 = sphi 0, %s50
    %s78 = sphi 0, %s80
    %s81 = sphi 0, %s78
    %s82 = sphi 0, %s81
    %s98 = sphi 0, %s82
    %s106 = sphi 0, %s108
    %s109 = sphi 0, %s106
    %s110 = sphi 0, %s109
    %s126 = sphi 0, %s110
    %s134 = sphi 0, %s136
    %s137 = sphi 0, %s134
    %s138 = sphi 0, %s137
    %s154 = sphi 0, %s138
    %s162 = sphi 0, %s164
    %s165 = sphi 0, %s162
    %s166 = sphi 0, %s165
    %s182 = sphi 0, %s166
  $region4: #{content_loss_forward.1} parent=0 // loop_header_branch
    %14 = sbr.rel (%p12) target = $region8
  $region5: #{content_loss_forward.1} parent=0 // loop_body
    %s16 = ssub.s32 %s11, 1
    %s17 = ssub.s32 %s11, 2
    %s27 = sadd.s32 1, %s20
    %p28 = scmp.ge.s32.totalorder %s27, 2
    %s29 = scalar_select %p28, 0, %s27
    %s30 = sadd.s32 1, %s19
    %s31 = scalar_select %p28, %s30, %s19
    %p32 = scmp.ge.s32.totalorder %s31, 1
    %s33 = scalar_select %p32, 0, %s31
    %s34 = sadd.s32 1, %s18
    %s35 = scalar_select %p32, %s34, %s18
    %p36 = scmp.ge.s32.totalorder %s35, 1
    %s37 = scalar_select %p36, 0, %s35
    %s38 = smul.u32 %s19, 2
    %s39 = sadd.s32 %s38, %s20
    %s40 = smul.u32 %s33, 2
    %s41 = sadd.s32 %s40, %s29
    %s42 = ssub.s32 %s18, %s37
    %s43 = ssub.s32 %s39, %s41
    %s44 = sor.u32 %s42, %s43
    %p45 = scmp.eq.s32.totalorder %s44, 0
    %s47 = sadd.s32 %s46, 1
    %s48 = scalar_select %p45, %s46, %s47
    %p51 = pneg %p45
    %p52 = scmp.eq.s32.totalorder %s11, 1
    %p53 = por %p51, %p52
    %p54 = scmp.ne.s32.totalorder %s46, %s49
    %p55 = scmp.eq.s32.totalorder %s11, 0
    %p56 = por %p54, %p55
    %p57 = scmp.ne.s32.totalorder %s46, %s49
    %p58 = scmp.eq.s32.totalorder %s16, 1
    %p59 = por %p57, %p58
    %p60 = scmp.ne.s32.totalorder %s49, %s50
    %p61 = scmp.eq.s32.totalorder %s16, 0
    %p62 = por %p60, %p61
    %p63 = scmp.ne.s32.totalorder %s49, %s50
    %p64 = scmp.eq.s32.totalorder %s17, 1
    %p65 = por %p63, %p64
    %p67 = scmp.ne.s32.totalorder %s50, %s66
    %p68 = scmp.eq.s32.totalorder %s17, 0
    %p69 = por %p67, %p68
    %s70 = smul.u32 %s19, 2
    %s71 = sadd.s32 %s70, %s20
    %s72 = smul.u32 %s33, 2
    %s73 = sadd.s32 %s72, %s29
    %s74 = ssub.s32 %s18, %s37
    %s75 = ssub.s32 %s71, %s73
    %s76 = sor.u32 %s74, %s75
    %p77 = scmp.eq.s32.totalorder %s76, 0
    %s79 = sadd.s32 %s78, 1
    %s80 = scalar_select %p77, %s78, %s79
    %p83 = pneg %p77
    %p84 = scmp.eq.s32.totalorder %s11, 1
    %p85 = por %p83, %p84
    %p86 = scmp.ne.s32.totalorder %s78, %s81
    %p87 = scmp.eq.s32.totalorder %s11, 0
    %p88 = por %p86, %p87
    %p89 = scmp.ne.s32.totalorder %s78, %s81
    %p90 = scmp.eq.s32.totalorder %s16, 1
    %p91 = por %p89, %p90
    %p92 = scmp.ne.s32.totalorder %s81, %s82
    %p93 = scmp.eq.s32.totalorder %s16, 0
    %p94 = por %p92, %p93
    %p95 = scmp.ne.s32.totalorder %s81, %s82
    %p96 = scmp.eq.s32.totalorder %s17, 1
    %p97 = por %p95, %p96
    %p99 = scmp.ne.s32.totalorder %s82, %s98
    %p100 = scmp.eq.s32.totalorder %s17, 0
    %p101 = por %p99, %p100
    %s102 = ssub.s32 %s19, %s33
    %s103 = ssub.s32 %s18, %s37
    %s104 = sor.u32 %s102, %s103
    %p105 = scmp.eq.s32.totalorder %s104, 0
    %s107 = sadd.s32 %s106, 1
    %s108 = scalar_select %p105, %s106, %s107
    %p111 = pneg %p105
    %p112 = scmp.eq.s32.totalorder %s11, 1
    %p113 = por %p111, %p112
    %p114 = scmp.ne.s32.totalorder %s106, %s109
    %p115 = scmp.eq.s32.totalorder %s11, 0
    %p116 = por %p114, %p115
    %p117 = scmp.ne.s32.totalorder %s106, %s109
    %p118 = scmp.eq.s32.totalorder %s16, 1
    %p119 = por %p117, %p118
    %p120 = scmp.ne.s32.totalorder %s109, %s110
    %p121 = scmp.eq.s32.totalorder %s16, 0
    %p122 = por %p120, %p121
    %p123 = scmp.ne.s32.totalorder %s109, %s110
    %p124 = scmp.eq.s32.totalorder %s17, 1
    %p125 = por %p123, %p124
    %p127 = scmp.ne.s32.totalorder %s110, %s126
    %p128 = scmp.eq.s32.totalorder %s17, 0
    %p129 = por %p127, %p128
    %s130 = ssub.s32 %s19, %s33
    %s131 = ssub.s32 %s18, %s37
    %s132 = sor.u32 %s130, %s131
    %p133 = scmp.eq.s32.totalorder %s132, 0
    %s135 = sadd.s32 %s134, 1
    %s136 = scalar_select %p133, %s134, %s135
    %p139 = pneg %p133
    %p140 = scmp.eq.s32.totalorder %s11, 1
    %p141 = por %p139, %p140
    %p142 = scmp.ne.s32.totalorder %s134, %s137
    %p143 = scmp.eq.s32.totalorder %s11, 0
    %p144 = por %p142, %p143
    %p145 = scmp.ne.s32.totalorder %s134, %s137
    %p146 = scmp.eq.s32.totalorder %s16, 1
    %p147 = por %p145, %p146
    %p148 = scmp.ne.s32.totalorder %s137, %s138
    %p149 = scmp.eq.s32.totalorder %s16, 0
    %p150 = por %p148, %p149
    %p151 = scmp.ne.s32.totalorder %s137, %s138
    %p152 = scmp.eq.s32.totalorder %s17, 1
    %p153 = por %p151, %p152
    %p155 = scmp.ne.s32.totalorder %s138, %s154
    %p156 = scmp.eq.s32.totalorder %s17, 0
    %p157 = por %p155, %p156
    %s158 = ssub.s32 %s19, %s33
    %s159 = ssub.s32 %s18, %s37
    %s160 = sor.u32 %s158, %s159
    %p161 = scmp.eq.s32.totalorder %s160, 0
    %s163 = sadd.s32 %s162, 1
    %s164 = scalar_select %p161, %s162, %s163
    %p167 = pneg %p161
    %p168 = scmp.eq.s32.totalorder %s11, 1
    %p169 = por %p167, %p168
    %p170 = scmp.ne.s32.totalorder %s162, %s165
    %p171 = scmp.eq.s32.totalorder %s11, 0
    %p172 = por %p170, %p171
    %p173 = scmp.ne.s32.totalorder %s162, %s165
    %p174 = scmp.eq.s32.totalorder %s16, 1
    %p175 = por %p173, %p174
    %p176 = scmp.ne.s32.totalorder %s165, %s166
    %p177 = scmp.eq.s32.totalorder %s16, 0
    %p178 = por %p176, %p177
    %p179 = scmp.ne.s32.totalorder %s165, %s166
    %p180 = scmp.eq.s32.totalorder %s17, 1
    %p181 = por %p179, %p180
    %p183 = scmp.ne.s32.totalorder %s166, %s182
    %p184 = scmp.eq.s32.totalorder %s17, 0
    %p185 = por %p183, %p184
    %p186 = scmp.le.s32.totalorder 1, %s11
    %p187 = scmp.lt.s32.totalorder %s11, 3
    %p188 = pnand %p186, %p187
    %p189 = pneg %p188
    // Predicated region
    $region9: #{content_loss_forward.1} parent=5 // pred_check
      _
    $region10: #{content_loss_forward.1} parent=5 // pred_check_branch
      %191 = sbr.rel (%p188) target = $region12
    $region11: #{content_loss_forward.1} parent=5 // pred_region
      %s192 = ssub.s32 %s11, 1
    $region12: #{content_loss_forward.1} parent=5 // pred_fallthru
      _
    %p193 = scmp.lt.s32.totalorder %s11, 2
    // Predicated region
    $region13: #{content_loss_forward.1} parent=5 // pred_check
      %p194 = pneg %p193
    $region14: #{content_loss_forward.1} parent=5 // pred_check_branch
      %196 = sbr.rel (%p194) target = $region16
    $region15: #{content_loss_forward.1} parent=5 // pred_region
      // Predicated region
      $region17: #{content_loss_forward.1} parent=15 // pred_check
        %p197 = pneg %p56
      $region18: #{content_loss_forward.1} parent=15 // pred_check_branch
        %199 = sbr.rel (%p197) target = $region20
      $region19: #{content_loss_forward.1} parent=15 // pred_region
        %s200 = smul.u32 %s19, 2
        %s201 = sadd.s32 %s200, %s20
        %p202 = scmp.lt.s32.totalorder %s18, 0
        %s203 = scalar_select %p202, %s18, 0
        %p204 = scmp.lt.s32.totalorder %s201, 1
        %s205 = scalar_select %p204, %s201, 1
        %s206 = smul.addr %s203, 2
        %s207 = sadd.s32 %s205, %s206
        %s208 = smul.addr %s207, 8
        %s209 = scalar_lea.vmem %s0, %s208
        %s210 = smul.u32 %s19, 2
        %s211 = sadd.s32 %s210, %s20
      $region20: #{content_loss_forward.1} parent=15 // pred_fallthru
        _
      // Predicated region
      $region21: #{content_loss_forward.1} parent=15 // pred_check
        %p212 = pneg %p88
      $region22: #{content_loss_forward.1} parent=15 // pred_check_branch
        %214 = sbr.rel (%p212) target = $region24
      $region23: #{content_loss_forward.1} parent=15 // pred_region
        %s215 = smul.u32 %s19, 2
        %s216 = sadd.s32 %s215, %s20
        %p217 = scmp.lt.s32.totalorder %s18, 0
        %s218 = scalar_select %p217, %s18, 0
        %p219 = scmp.lt.s32.totalorder %s216, 1
        %s220 = scalar_select %p219, %s216, 1
        %s221 = smul.addr %s218, 2
        %s222 = sadd.s32 %s220, %s221
        %s223 = smul.addr %s222, 8
        %s224 = scalar_lea.vmem %s1, %s223
        %s225 = smul.u32 %s19, 2
        %s226 = sadd.s32 %s225, %s20
      $region24: #{content_loss_forward.1} parent=15 // pred_fallthru
        _
    $region16: #{content_loss_forward.1} parent=5 // pred_fallthru
      _
    %p227 = scmp.le.s32.totalorder 1, %s11
    %p228 = scmp.lt.s32.totalorder %s11, 3
    %p229 = pnand %p227, %p228
    %p230 = pneg %p229
    // Predicated region
    $region25: #{content_loss_forward.1} parent=5 // pred_check
      _
    $region26: #{content_loss_forward.1} parent=5 // pred_check_branch
      %232 = sbr.rel (%p229) target = $region28
    $region27: #{content_loss_forward.1} parent=5 // pred_region
      %s233 = ssub.s32 %s11, 1
      %s234 = smul.u32 %s22, 2
      %s235 = sadd.s32 %s234, %s23
      %p236 = scmp.lt.s32.totalorder %s21, 0
      %s237 = scalar_select %p236, %s21, 0
      %p238 = scmp.lt.s32.totalorder %s235, 1
      %s239 = scalar_select %p238, %s235, 1
      %s240 = smul.addr %s237, 2
      %s241 = sadd.s32 %s239, %s240
      %s242 = smul.addr %s241, 8
      %s243 = scalar_lea.vmem %s0, %s242
      %p244 = pneg %p62
      %p245 = pneg %p59
      %s246 = smul.u32 %s22, 2
      %s247 = sadd.s32 %s246, %s23
      %p248 = scmp.lt.s32.totalorder %s21, 0
      %s249 = scalar_select %p248, %s21, 0
      %p250 = scmp.lt.s32.totalorder %s247, 1
      %s251 = scalar_select %p250, %s247, 1
      %s252 = smul.addr %s249, 2
      %s253 = sadd.s32 %s251, %s252
      %s254 = smul.addr %s253, 8
      %s255 = scalar_lea.vmem %s1, %s254
      %p256 = pneg %p94
      %p257 = pneg %p91
      %p258 = pneg %p122
      %p259 = pneg %p119
      %p260 = scmp.lt.s32.totalorder %s22, 0
      %s261 = scalar_select %p260, %s22, 0
      %p262 = scmp.lt.s32.totalorder %s21, 0
      %s263 = scalar_select %p262, %s21, 0
      %s264 = sadd.s32 %s263, %s261
      %s265 = smul.addr %s264, 8
      %s266 = scalar_lea.vmem %s2, %s265
      %p267 = pneg %p150
      %p268 = pneg %p147
      %p269 = scmp.lt.s32.totalorder %s22, 0
      %s270 = scalar_select %p269, %s22, 0
      %p271 = scmp.lt.s32.totalorder %s21, 0
      %s272 = scalar_select %p271, %s21, 0
      %s273 = sadd.s32 %s272, %s270
      %s274 = smul.addr %s273, 8
      %s275 = scalar_lea.vmem %s3, %s274
      %p276 = pneg %p178
      %p277 = pneg %p175
      %p278 = scmp.lt.s32.totalorder %s22, 0
      %s279 = scalar_select %p278, %s22, 0
      %p280 = scmp.lt.s32.totalorder %s21, 0
      %s281 = scalar_select %p280, %s21, 0
      %s282 = sadd.s32 %s281, %s279
      %s283 = smul.addr %s282, 8
      %s284 = scalar_lea.vmem %s4, %s283
      %s285 = smul.u32 %s22, 2
      %s286 = sadd.s32 %s285, %s23
      %p287 = scmp.lt.s32.totalorder %s21, 0
      %s288 = scalar_select %p287, %s21, 0
      %p289 = scmp.lt.s32.totalorder %s286, 1
      %s290 = scalar_select %p289, %s286, 1
      %s291 = smul.addr %s288, 2
      %s292 = sadd.s32 %s290, %s291
      %s293 = smul.addr %s292, 8
      %s294 = scalar_lea.vmem %s0, %s293
      %s295 = smul.u32 %s22, 2
      %s296 = sadd.s32 %s295, %s23
      %s297 = smul.u32 %s22, 2
      %s298 = sadd.s32 %s297, %s23
      %p299 = scmp.lt.s32.totalorder %s21, 0
      %s300 = scalar_select %p299, %s21, 0
      %p301 = scmp.lt.s32.totalorder %s298, 1
      %s302 = scalar_select %p301, %s298, 1
      %s303 = smul.addr %s300, 2
      %s304 = sadd.s32 %s302, %s303
      %s305 = smul.addr %s304, 8
      %s306 = scalar_lea.vmem %s1, %s305
      %s307 = smul.u32 %s22, 2
      %s308 = sadd.s32 %s307, %s23
      %p309 = scmp.lt.s32.totalorder %s22, 0
      %s310 = scalar_select %p309, %s22, 0
      %p311 = scmp.lt.s32.totalorder %s21, 0
      %s312 = scalar_select %p311, %s21, 0
      %s313 = sadd.s32 %s312, %s310
      %s314 = smul.addr %s313, 8
      %s315 = scalar_lea.vmem %s2, %s314
      %p316 = scmp.lt.s32.totalorder %s22, 0
      %s317 = scalar_select %p316, %s22, 0
      %p318 = scmp.lt.s32.totalorder %s21, 0
      %s319 = scalar_select %p318, %s21, 0
      %s320 = sadd.s32 %s319, %s317
      %s321 = smul.addr %s320, 8
      %s322 = scalar_lea.vmem %s3, %s321
      %p323 = scmp.lt.s32.totalorder %s22, 0
      %s324 = scalar_select %p323, %s22, 0
      %p325 = scmp.lt.s32.totalorder %s21, 0
      %s326 = scalar_select %p325, %s21, 0
      %s327 = sadd.s32 %s326, %s324
      %s328 = smul.addr %s327, 8
      %s329 = scalar_lea.vmem %s4, %s328
      %p330 = scmp.eq.s32.totalorder %s23, 0
      // Predicated region
      $region29: #{content_loss_forward.1} parent=27 // pred_check
        %p331 = pneg %p330
      $region30: #{content_loss_forward.1} parent=27 // pred_check_branch
        %333 = sbr.rel (%p331) target = $region32
      $region31: #{content_loss_forward.1} parent=27 // pred_region
        %334 = vst [vmem:[%s315] sm:$0xff] 0.0
        %335 = vst [vmem:[%s322] sm:$0xff] 0.0
        %336 = vst [vmem:[%s329] sm:$0xff] 0.0
      $region32: #{content_loss_forward.1} parent=27 // pred_fallthru
        _
      %v337 = vld [vmem:[%s315] sm:$0xff]
      %v338 = vld [vmem:[%s322] sm:$0xff]
      %v339 = vld [vmem:[%s329] sm:$0xff]
      %v340 = vld [vmem:[%s294] sm:$0xff]
      %v341 = vld [vmem:[%s306] sm:$0xff]
      %v342 = vmul.f32 %v340, %v341
      %v343 = vadd.f32 %v337, %v342
      %v344 = vmul.f32 %v340, %v340
      %v345 = vadd.f32 %v338, %v344
      %v346 = vmul.f32 %v341, %v341
      %v347 = vadd.f32 %v339, %v346
      %348 = vst [vmem:[%s315] sm:$0xff] %v343
      %349 = vst [vmem:[%s322] sm:$0xff] %v345
      %350 = vst [vmem:[%s329] sm:$0xff] %v347
      %p351 = scmp.lt.s32.totalorder %s22, 0
      %s352 = scalar_select %p351, %s22, 0
      %p353 = scmp.lt.s32.totalorder %s21, 0
      %s354 = scalar_select %p353, %s21, 0
      %s355 = sadd.s32 %s354, %s352
      %s356 = smul.addr %s355, 8
      %s357 = scalar_lea.vmem %s2, %s356
      %p358 = scmp.lt.s32.totalorder %s22, 0
      %s359 = scalar_select %p358, %s22, 0
      %p360 = scmp.lt.s32.totalorder %s21, 0
      %s361 = scalar_select %p360, %s21, 0
      %s362 = sadd.s32 %s361, %s359
      %s363 = smul.addr %s362, 8
      %s364 = scalar_lea.vmem %s3, %s363
      %p365 = scmp.lt.s32.totalorder %s22, 0
      %s366 = scalar_select %p365, %s22, 0
      %p367 = scmp.lt.s32.totalorder %s21, 0
      %s368 = scalar_select %p367, %s21, 0
      %s369 = sadd.s32 %s368, %s366
      %s370 = smul.addr %s369, 8
      %s371 = scalar_lea.vmem %s4, %s370
      // Predicated region
      $region33: #{content_loss_forward.1} parent=27 // pred_check
        %p372 = pneg %p119
      $region34: #{content_loss_forward.1} parent=27 // pred_check_branch
        %374 = sbr.rel (%p372) target = $region36
      $region35: #{content_loss_forward.1} parent=27 // pred_region
        _
      $region36: #{content_loss_forward.1} parent=27 // pred_fallthru
        _
      // Predicated region
      $region37: #{content_loss_forward.1} parent=27 // pred_check
        %p375 = pneg %p147
      $region38: #{content_loss_forward.1} parent=27 // pred_check_branch
        %377 = sbr.rel (%p375) target = $region40
      $region39: #{content_loss_forward.1} parent=27 // pred_region
        _
      $region40: #{content_loss_forward.1} parent=27 // pred_fallthru
        _
      // Predicated region
      $region41: #{content_loss_forward.1} parent=27 // pred_check
        %p378 = pneg %p175
      $region42: #{content_loss_forward.1} parent=27 // pred_check_branch
        %380 = sbr.rel (%p378) target = $region44
      $region43: #{content_loss_forward.1} parent=27 // pred_region
        _
      $region44: #{content_loss_forward.1} parent=27 // pred_fallthru
        _
      // Predicated region
      $region45: #{content_loss_forward.1} parent=27 // pred_check
        %p381 = pneg %p119
      $region46: #{content_loss_forward.1} parent=27 // pred_check_branch
        %383 = sbr.rel (%p381) target = $region48
      $region47: #{content_loss_forward.1} parent=27 // pred_region
        %p384 = scmp.lt.s32.totalorder %s22, 0
        %s385 = scalar_select %p384, %s22, 0
        %p386 = scmp.lt.s32.totalorder %s21, 0
        %s387 = scalar_select %p386, %s21, 0
        %s388 = sadd.s32 %s387, %s385
        %s389 = smul.addr %s388, 8
        %s390 = scalar_lea.vmem %s2, %s389
      $region48: #{content_loss_forward.1} parent=27 // pred_fallthru
        _
      // Predicated region
      $region49: #{content_loss_forward.1} parent=27 // pred_check
        %p391 = pneg %p147
      $region50: #{content_loss_forward.1} parent=27 // pred_check_branch
        %393 = sbr.rel (%p391) target = $region52
      $region51: #{content_loss_forward.1} parent=27 // pred_region
        %p394 = scmp.lt.s32.totalorder %s22, 0
        %s395 = scalar_select %p394, %s22, 0
        %p396 = scmp.lt.s32.totalorder %s21, 0
        %s397 = scalar_select %p396, %s21, 0
        %s398 = sadd.s32 %s397, %s395
        %s399 = smul.addr %s398, 8
        %s400 = scalar_lea.vmem %s3, %s399
      $region52: #{content_loss_forward.1} parent=27 // pred_fallthru
        _
      // Predicated region
      $region53: #{content_loss_forward.1} parent=27 // pred_check
        %p401 = pneg %p175
      $region54: #{content_loss_forward.1} parent=27 // pred_check_branch
        %403 = sbr.rel (%p401) target = $region56
      $region55: #{content_loss_forward.1} parent=27 // pred_region
        %p404 = scmp.lt.s32.totalorder %s22, 0
        %s405 = scalar_select %p404, %s22, 0
        %p406 = scmp.lt.s32.totalorder %s21, 0
        %s407 = scalar_select %p406, %s21, 0
        %s408 = sadd.s32 %s407, %s405
        %s409 = smul.addr %s408, 8
        %s410 = scalar_lea.vmem %s4, %s409
      $region56: #{content_loss_forward.1} parent=27 // pred_fallthru
        _
    $region28: #{content_loss_forward.1} parent=5 // pred_fallthru
      _
    %p411 = scmp.le.s32.totalorder 2, %s11
    // Predicated region
    $region57: #{content_loss_forward.1} parent=5 // pred_check
      %p412 = pneg %p411
    $region58: #{content_loss_forward.1} parent=5 // pred_check_branch
      %414 = sbr.rel (%p412) target = $region60
    $region59: #{content_loss_forward.1} parent=5 // pred_region
      %s415 = ssub.s32 %s11, 2
    $region60: #{content_loss_forward.1} parent=5 // pred_fallthru
      _
  $region6: #{content_loss_forward.1} parent=0 // loop_footer
    %s15 = sadd.s32 1, %s11
  $region7: #{content_loss_forward.1} parent=0 // loop_footer_branch
    %10 = sbr.rel target = $region3
  $region8: #{content_loss_forward.1} parent=0 // loop_exit
    _

</llo_original>
